<compile_context>
chip_gen: v5e
topology: v5e:2x2
jax: 0.10.0
libtpu: 0.0.40
codegen_flags: <defaults>
</compile_context>

<pallas_src>
import functools

import jax
import jax.numpy as jnp
from jax.experimental import pallas as pl
from jax.experimental.pallas import tpu as pltpu


def _round_up(x, m):
    return (x + m - 1) // m * m


def node_readout_kernel(h_ref, w1_ref, b1_ref, w2_ref, b2_ref, o_ref):
    # First linear: f32 MXU matmul with f32 accumulation; bias + ReLU on VPU.
    hidden = jnp.dot(h_ref[...], w1_ref[...], preferred_element_type=jnp.float32)
    hidden = jnp.maximum(hidden + b1_ref[...], 0.0)            # (tm, H) + (1, H)
    # Second linear straight to the unpadded output width.
    out = jnp.dot(hidden, w2_ref[...], preferred_element_type=jnp.float32)
    o_ref[...] = (out + b2_ref[...]).astype(o_ref.dtype)       # (tm, D_out) + (1, D_out)


@functools.partial(jax.jit, static_argnames=("tile_m",))
def node_readout(h, w1, b1, w2, b2, *, tile_m=1024):
    N, D_in = h.shape
    H = w1.shape[1]
    D_out = w2.shape[1]

    # Node tile: as large as tile_m, capped at N (rounded up to a sublane
    # multiple of 8 so the BlockSpec satisfies the (8, 128) constraint).
    # Large tiles amortize per-grid-step overhead; for large N the grid still
    # has many steps, so v7x megacore sharding ("parallel") stays balanced.
    tile_eff = min(tile_m, _round_up(N, 8))
    grid = (pl.cdiv(N, tile_eff),)   # ragged last tile handled by Pallas

    # Biases as 2-D rows so they broadcast over the node tile.
    b1_2d = b1.reshape(1, H)
    b2_2d = b2.reshape(1, D_out)

    flops = 2 * N * (D_in * H + H * D_out)
    bytes_accessed = 4 * (N * D_in + D_in * H + H + H * D_out + D_out + N * D_out)

    return pl.pallas_call(
        node_readout_kernel,
        out_shape=jax.ShapeDtypeStruct((N, D_out), jnp.float32),
        grid_spec=pl.GridSpec(
            grid=grid,
            in_specs=[
                pl.BlockSpec((tile_eff, D_in), lambda i: (i, 0)),   # node tile
                pl.BlockSpec((D_in, H), lambda i: (0, 0)),          # W1 (resident)
                pl.BlockSpec((1, H), lambda i: (0, 0)),             # b1
                pl.BlockSpec((H, D_out), lambda i: (0, 0)),         # W2 (resident)
                pl.BlockSpec((1, D_out), lambda i: (0, 0)),         # b2
            ],
            out_specs=pl.BlockSpec((tile_eff, D_out), lambda i: (i, 0)),
        ),
        compiler_params=pltpu.CompilerParams(
            dimension_semantics=("parallel",),
        ),
        cost_estimate=pl.CostEstimate(
            flops=flops, transcendentals=0, bytes_accessed=bytes_accessed),
    )(h, w1, b1_2d, w2, b2_2d)


def reference(h, w1, b1, w2, b2):
    return jnp.maximum(h @ w1 + b1, 0.0) @ w2 + b2


if __name__ == "__main__":
    # Small shapes consistent with NodeReadout(input_size, output_size, hidden_size).
    N = 256          # number of nodes
    input_size = 64
    hidden_size = 128
    output_size = 32

    key = jax.random.PRNGKey(0)
    k_h, k_w1, k_b1, k_w2, k_b2 = jax.random.split(key, 5)

    # Deterministic init mimicking nn.Linear default: U(-1/sqrt(fan_in), 1/sqrt(fan_in)).
    lim1 = 1.0 / jnp.sqrt(jnp.float32(input_size))
    lim2 = 1.0 / jnp.sqrt(jnp.float32(hidden_size))

    h = jax.random.normal(k_h, (N, input_size), dtype=jnp.float32)
    w1 = jax.random.uniform(k_w1, (input_size, hidden_size), jnp.float32, -lim1, lim1)
    b1 = jax.random.uniform(k_b1, (hidden_size,), jnp.float32, -lim1, lim1)
    w2 = jax.random.uniform(k_w2, (hidden_size, output_size), jnp.float32, -lim2, lim2)
    b2 = jax.random.uniform(k_b2, (hidden_size,), jnp.float32, -lim2, lim2)[:output_size] \
        if False else jax.random.uniform(k_b2, (output_size,), jnp.float32, -lim2, lim2)

    out = node_readout(h, w1, b1, w2, b2)
    out = jax.block_until_ready(out)

    ref = reference(h, w1, b1, w2, b2)
    assert out.shape == (N, output_size)
    # Full f32 path (f32 operands, f32 MXU accumulation) -> tight tolerance.
    assert jnp.allclose(out, ref, atol=1e-3, rtol=1e-3), "mismatch vs reference"

    print("KERNEL_OK")
</pallas_src>

<mosaic_0001>
module attributes {stable_mosaic.version = 11 : i64} {
  func.func @node_readout_kernel(%arg0: i32, %arg1: memref<256x64xf32, #tpu.memory_space<vmem>>, %arg2: memref<64x128xf32, #tpu.memory_space<vmem>>, %arg3: memref<1x128xf32, #tpu.memory_space<vmem>>, %arg4: memref<128x32xf32, #tpu.memory_space<vmem>>, %arg5: memref<1x32xf32, #tpu.memory_space<vmem>>, %arg6: memref<256x32xf32, #tpu.memory_space<vmem>>) attributes {dimension_semantics = [#tpu.dimension_semantics<parallel>], iteration_bounds = array<i64: 1>, scalar_prefetch = 0 : i64, scratch_operands = 0 : i64, tpu.core_type = #tpu.core_type<tc>, window_params = [{transform_indices = @transform_0, window_bounds = array<i64: 256, 64>}, {pipeline_mode = #tpu.pipeline_mode<synchronous>, transform_indices = @transform_1, window_bounds = array<i64: 64, 128>}, {pipeline_mode = #tpu.pipeline_mode<synchronous>, transform_indices = @transform_2, window_bounds = array<i64: 1, 128>}, {pipeline_mode = #tpu.pipeline_mode<synchronous>, transform_indices = @transform_3, window_bounds = array<i64: 128, 32>}, {pipeline_mode = #tpu.pipeline_mode<synchronous>, transform_indices = @transform_4, window_bounds = array<i64: 1, 32>}, {transform_indices = @transform_5, window_bounds = array<i64: 256, 32>}]} {
    %c0 = arith.constant 0 : index
    %c0_0 = arith.constant 0 : index
    %0 = vector.load %arg1[%c0, %c0_0] : memref<256x64xf32, #tpu.memory_space<vmem>>, vector<256x64xf32>
    %c0_1 = arith.constant 0 : index
    %c0_2 = arith.constant 0 : index
    %1 = vector.load %arg2[%c0_1, %c0_2] : memref<64x128xf32, #tpu.memory_space<vmem>>, vector<64x128xf32>
    %cst = arith.constant dense<0.000000e+00> : vector<256x128xf32>
    %2 = tpu.matmul %0, %1, %cst {dimension_numbers = #tpu.dot_dimension_numbers<[1], [0], [0], [1], [0, 0, 1, 1], [], []>} : vector<256x64xf32>, vector<64x128xf32>, vector<256x128xf32> -> vector<256x128xf32>
    %c0_3 = arith.constant 0 : index
    %c0_4 = arith.constant 0 : index
    %3 = vector.load %arg3[%c0_3, %c0_4] : memref<1x128xf32, #tpu.memory_space<vmem>>, vector<1x128xf32>
    %4 = vector.broadcast %3 : vector<1x128xf32> to vector<256x128xf32>
    %5 = arith.addf %2, %4 : vector<256x128xf32>
    %cst_5 = arith.constant 0.000000e+00 : f32
    %6 = vector.broadcast %cst_5 : f32 to vector<256x128xf32>
    %7 = arith.maximumf %5, %6 : vector<256x128xf32>
    %c0_6 = arith.constant 0 : index
    %c0_7 = arith.constant 0 : index
    %8 = vector.load %arg4[%c0_6, %c0_7] : memref<128x32xf32, #tpu.memory_space<vmem>>, vector<128x32xf32>
    %cst_8 = arith.constant dense<0.000000e+00> : vector<256x32xf32>
    %9 = tpu.matmul %7, %8, %cst_8 {dimension_numbers = #tpu.dot_dimension_numbers<[1], [0], [0], [1], [0, 0, 1, 1], [], []>} : vector<256x128xf32>, vector<128x32xf32>, vector<256x32xf32> -> vector<256x32xf32>
    %c0_9 = arith.constant 0 : index
    %c0_10 = arith.constant 0 : index
    %10 = vector.load %arg5[%c0_9, %c0_10] : memref<1x32xf32, #tpu.memory_space<vmem>>, vector<1x32xf32>
    %11 = vector.broadcast %10 : vector<1x32xf32> to vector<256x32xf32>
    %12 = arith.addf %9, %11 : vector<256x32xf32>
    %c0_11 = arith.constant 0 : index
    %c0_12 = arith.constant 0 : index
    %13 = vector.load %arg6[%c0_11, %c0_12] : memref<256x32xf32, #tpu.memory_space<vmem>>, vector<256x32xf32>
    tpu.vector_store %arg6[%c0_11, %c0_12], %12 {strides = array<i32>} : memref<256x32xf32, #tpu.memory_space<vmem>>, vector<256x32xf32>,
    return
  }
  func.func @transform_0(%arg0: i32) -> (i32, i32) {
    %c0_i32 = arith.constant 0 : i32
    %c0_i32_0 = arith.constant 0 : i32
    return %arg0, %c0_i32 : i32, i32
  }
  func.func @transform_1(%arg0: i32) -> (i32, i32) {
    %c0_i32 = arith.constant 0 : i32
    %c0_i32_0 = arith.constant 0 : i32
    %c0_i32_1 = arith.constant 0 : i32
    return %c0_i32, %c0_i32_0 : i32, i32
  }
  func.func @transform_2(%arg0: i32) -> (i32, i32) {
    %c0_i32 = arith.constant 0 : i32
    %c0_i32_0 = arith.constant 0 : i32
    %c0_i32_1 = arith.constant 0 : i32
    return %c0_i32, %c0_i32_0 : i32, i32
  }
  func.func @transform_3(%arg0: i32) -> (i32, i32) {
    %c0_i32 = arith.constant 0 : i32
    %c0_i32_0 = arith.constant 0 : i32
    %c0_i32_1 = arith.constant 0 : i32
    return %c0_i32, %c0_i32_0 : i32, i32
  }
  func.func @transform_4(%arg0: i32) -> (i32, i32) {
    %c0_i32 = arith.constant 0 : i32
    %c0_i32_0 = arith.constant 0 : i32
    %c0_i32_1 = arith.constant 0 : i32
    return %c0_i32, %c0_i32_0 : i32, i32
  }
  func.func @transform_5(%arg0: i32) -> (i32, i32) {
    %c0_i32 = arith.constant 0 : i32
    %c0_i32_0 = arith.constant 0 : i32
    return %arg0, %c0_i32 : i32, i32
  }
}

</mosaic_0001>

<llo_original>
// kernel: node_readout.1
$region0: #{node_readout.1}
  #allocation0 [shape = 'u32[]', space=smem, size = 0x4, offset = 0x4, fixed_abs, tag = 'smem constant byte address 0x4 - core index']
  #allocation1 [shape = 'u32[72,128]{1,0:T(1,128)}', space=vmem, size = 0x9000, scoped, tag = 'internal scratch']
  %s0 = inlined_call_operand.vmem [shape: f32[256,64], index: 0, kind: input, shape index: {}]
  %s1 = inlined_call_operand.vmem [shape: f32[64,128], index: 1, kind: input, shape index: {}]
  %s2 = inlined_call_operand.vmem [shape: f32[1,128], index: 2, kind: input, shape index: {}]
  %s3 = inlined_call_operand.vmem [shape: f32[128,32], index: 3, kind: input, shape index: {}]
  %s4 = inlined_call_operand.vmem [shape: f32[1,32], index: 4, kind: input, shape index: {}]
  %s5 = inlined_call_operand.vmem [shape: f32[256,32], index: 5, kind: output, shape index: {}]
  %s6 = sld [smem:[#allocation0]]
  $region30: #{node_readout.1} parent=0
    _
  %s8 = ssub.s32 1, %s6
  %s9 = scalar_select 0, %s8, %s6
  // Predicated region
  $region2: #{node_readout.1} parent=0 // pred_check
    _
  $region3: #{node_readout.1} parent=0 // pred_check_branch
    %11 = sbr.rel (0) target = $region5
  $region4: #{node_readout.1} parent=0 // pred_region
    _
  $region5: #{node_readout.1} parent=0 // pred_fallthru
    _
  // Predicated region
  $region6: #{node_readout.1} parent=0 // pred_check
    _
  $region7: #{node_readout.1} parent=0 // pred_check_branch
    %13 = sbr.rel (0) target = $region9
  $region8: #{node_readout.1} parent=0 // pred_region
    _
  $region9: #{node_readout.1} parent=0 // pred_fallthru
    _
  // Predicated region
  $region10: #{node_readout.1} parent=0 // pred_check
    _
  $region11: #{node_readout.1} parent=0 // pred_check_branch
    %15 = sbr.rel (0) target = $region13
  $region12: #{node_readout.1} parent=0 // pred_region
    _
  $region13: #{node_readout.1} parent=0 // pred_fallthru
    _
  // Predicated region
  $region14: #{node_readout.1} parent=0 // pred_check
    _
  $region15: #{node_readout.1} parent=0 // pred_check_branch
    %17 = sbr.rel (0) target = $region17
  $region16: #{node_readout.1} parent=0 // pred_region
    _
  $region17: #{node_readout.1} parent=0 // pred_fallthru
    _
  // Predicated region
  $region18: #{node_readout.1} parent=0 // pred_check
    _
  $region19: #{node_readout.1} parent=0 // pred_check_branch
    %19 = sbr.rel (0) target = $region21
  $region20: #{node_readout.1} parent=0 // pred_region
    _
  $region21: #{node_readout.1} parent=0 // pred_fallthru
    _
  %v20 = vld [vmem:[%s0] sm:$0xff]
  %v21 = vld [vmem:[%s0 + $0x8] sm:$0xff]
  %v22 = vld [vmem:[%s0 + $0x10] sm:$0xff]
  %v23 = vld [vmem:[%s0 + $0x18] sm:$0xff]
  %v24 = vld [vmem:[%s0 + $0x20] sm:$0xff]
  %v25 = vld [vmem:[%s0 + $0x28] sm:$0xff]
  %v26 = vld [vmem:[%s0 + $0x30] sm:$0xff]
  %v27 = vld [vmem:[%s0 + $0x38] sm:$0xff]
  %v28 = vld [vmem:[%s0 + $0x40] sm:$0xff]
  %v29 = vld [vmem:[%s0 + $0x48] sm:$0xff]
  %v30 = vld [vmem:[%s0 + $0x50] sm:$0xff]
  %v31 = vld [vmem:[%s0 + $0x58] sm:$0xff]
  %v32 = vld [vmem:[%s0 + $0x60] sm:$0xff]
  %v33 = vld [vmem:[%s0 + $0x68] sm:$0xff]
  %v34 = vld [vmem:[%s0 + $0x70] sm:$0xff]
  %v35 = vld [vmem:[%s0 + $0x78] sm:$0xff]
  %v36 = vld [vmem:[%s0 + $0x80] sm:$0xff]
  %v37 = vld [vmem:[%s0 + $0x88] sm:$0xff]
  %v38 = vld [vmem:[%s0 + $0x90] sm:$0xff]
  %v39 = vld [vmem:[%s0 + $0x98] sm:$0xff]
  %v40 = vld [vmem:[%s0 + $0xa0] sm:$0xff]
  %v41 = vld [vmem:[%s0 + $0xa8] sm:$0xff]
  %v42 = vld [vmem:[%s0 + $0xb0] sm:$0xff]
  %v43 = vld [vmem:[%s0 + $0xb8] sm:$0xff]
  %v44 = vld [vmem:[%s0 + $0xc0] sm:$0xff]
  %v45 = vld [vmem:[%s0 + $0xc8] sm:$0xff]
  %v46 = vld [vmem:[%s0 + $0xd0] sm:$0xff]
  %v47 = vld [vmem:[%s0 + $0xd8] sm:$0xff]
  %v48 = vld [vmem:[%s0 + $0xe0] sm:$0xff]
  %v49 = vld [vmem:[%s0 + $0xe8] sm:$0xff]
  %v50 = vld [vmem:[%s0 + $0xf0] sm:$0xff]
  %v51 = vld [vmem:[%s0 + $0xf8] sm:$0xff]
  %v52 = vld [vmem:[%s1] sm:$0xff]
  %v53 = vld [vmem:[%s1 + $0x8] sm:$0xff]
  %v54 = vld [vmem:[%s1 + $0x10] sm:$0xff]
  %v55 = vld [vmem:[%s1 + $0x18] sm:$0xff]
  %v56 = vld [vmem:[%s1 + $0x20] sm:$0xff]
  %v57 = vld [vmem:[%s1 + $0x28] sm:$0xff]
  %v58 = vld [vmem:[%s1 + $0x30] sm:$0xff]
  %v59 = vld [vmem:[%s1 + $0x38] sm:$0xff]
  %v60 = vld [vmem:[%s2] sm:$0x1]
  %v62 = vperm.slane %v60, 0
  %vm64 = vcmask 523264
  %v66 = vsel %vm64, %v20, 0
  %v69 = vsel %vm64, %v21, 0
  %v72 = vsel %vm64, %v22, 0
  %v75 = vsel %vm64, %v23, 0
  %v78 = vsel %vm64, %v24, 0
  %v81 = vsel %vm64, %v25, 0
  %v84 = vsel %vm64, %v26, 0
  %v87 = vsel %vm64, %v27, 0
  %v90 = vsel %vm64, %v28, 0
  %v93 = vsel %vm64, %v29, 0
  %v96 = vsel %vm64, %v30, 0
  %v99 = vsel %vm64, %v31, 0
  %v102 = vsel %vm64, %v32, 0
  %v105 = vsel %vm64, %v33, 0
  %v108 = vsel %vm64, %v34, 0
  %v111 = vsel %vm64, %v35, 0
  %v114 = vsel %vm64, %v36, 0
  %v117 = vsel %vm64, %v37, 0
  %v120 = vsel %vm64, %v38, 0
  %v123 = vsel %vm64, %v39, 0
  %v126 = vsel %vm64, %v40, 0
  %v129 = vsel %vm64, %v41, 0
  %v132 = vsel %vm64, %v42, 0
  %v135 = vsel %vm64, %v43, 0
  %v138 = vsel %vm64, %v44, 0
  %v141 = vsel %vm64, %v45, 0
  %v144 = vsel %vm64, %v46, 0
  %v147 = vsel %vm64, %v47, 0
  %v150 = vsel %vm64, %v48, 0
  %v153 = vsel %vm64, %v49, 0
  %v156 = vsel %vm64, %v50, 0
  %v159 = vsel %vm64, %v51, 0
  %161 = vmatpush.msra.mxu0 0.0
  %162 = vmatpush.msra.mxu0 0.0
  %163 = vmatpush.msra.mxu0 0.0
  %164 = vmatpush.msra.mxu0 0.0
  %165 = vmatpush.msra.mxu0 0.0
  %166 = vmatpush.msra.mxu0 0.0
  %167 = vmatpush.msra.mxu0 0.0
  %168 = vmatpush.msra.mxu0 0.0
  %169 = vmatpush.msra.mxu0 %v59
  %170 = vmatpush.msra.mxu0 %v58
  %171 = vmatpush.msra.mxu0 %v57
  %172 = vmatpush.msra.mxu0 %v56
  %173 = vmatpush.msra.mxu0 %v55
  %174 = vmatpush.msra.mxu0 %v54
  %175 = vmatpush.msra.mxu0 %v53
  %176 = vmatpush.msra.mxu0 %v52
  %177 = vmatmul.f32.gmra.mxu0 %v66
  %v178 = vpop.f32.mrf.mxu0
  %v179 = vadd.f32 %v62, %v178
  %180 = vmatmul.f32.gmra.mxu0 %v69
  %v181 = vpop.f32.mrf.mxu0
  %v182 = vadd.f32 %v62, %v181
  %183 = vmatmul.f32.gmra.mxu0 %v72
  %v184 = vpop.f32.mrf.mxu0
  %v185 = vadd.f32 %v62, %v184
  %186 = vmatmul.f32.gmra.mxu0 %v75
  %v187 = vpop.f32.mrf.mxu0
  %v188 = vadd.f32 %v62, %v187
  %189 = vmatmul.f32.gmra.mxu0 %v78
  %v190 = vpop.f32.mrf.mxu0
  %v191 = vadd.f32 %v62, %v190
  %192 = vmatmul.f32.gmra.mxu0 %v81
  %v193 = vpop.f32.mrf.mxu0
  %v194 = vadd.f32 %v62, %v193
  %195 = vmatmul.f32.gmra.mxu0 %v84
  %v196 = vpop.f32.mrf.mxu0
  %v197 = vadd.f32 %v62, %v196
  %198 = vmatmul.f32.gmra.mxu0 %v87
  %v199 = vpop.f32.mrf.mxu0
  %v200 = vadd.f32 %v62, %v199
  %201 = vmatmul.f32.gmra.mxu0 %v90
  %v202 = vpop.f32.mrf.mxu0
  %v203 = vadd.f32 %v62, %v202
  %204 = vmatmul.f32.gmra.mxu0 %v93
  %v205 = vpop.f32.mrf.mxu0
  %v206 = vadd.f32 %v62, %v205
  %207 = vmatmul.f32.gmra.mxu0 %v96
  %v208 = vpop.f32.mrf.mxu0
  %v209 = vadd.f32 %v62, %v208
  %210 = vmatmul.f32.gmra.mxu0 %v99
  %v211 = vpop.f32.mrf.mxu0
  %v212 = vadd.f32 %v62, %v211
  %213 = vmatmul.f32.gmra.mxu0 %v102
  %v214 = vpop.f32.mrf.mxu0
  %v215 = vadd.f32 %v62, %v214
  %216 = vmatmul.f32.gmra.mxu0 %v105
  %v217 = vpop.f32.mrf.mxu0
  %v218 = vadd.f32 %v62, %v217
  %219 = vmatmul.f32.gmra.mxu0 %v108
  %v220 = vpop.f32.mrf.mxu0
  %v221 = vadd.f32 %v62, %v220
  %222 = vmatmul.f32.gmra.mxu0 %v111
  %v223 = vpop.f32.mrf.mxu0
  %v224 = vadd.f32 %v62, %v223
  %225 = vmatmul.f32.gmra.mxu0 %v114
  %v226 = vpop.f32.mrf.mxu0
  %v227 = vadd.f32 %v62, %v226
  %228 = vmatmul.f32.gmra.mxu0 %v117
  %v229 = vpop.f32.mrf.mxu0
  %v230 = vadd.f32 %v62, %v229
  %231 = vmatmul.f32.gmra.mxu0 %v120
  %v232 = vpop.f32.mrf.mxu0
  %v233 = vadd.f32 %v62, %v232
  %234 = vmatmul.f32.gmra.mxu0 %v123
  %v235 = vpop.f32.mrf.mxu0
  %v236 = vadd.f32 %v62, %v235
  %237 = vmatmul.f32.gmra.mxu0 %v126
  %v238 = vpop.f32.mrf.mxu0
  %v239 = vadd.f32 %v62, %v238
  %240 = vmatmul.f32.gmra.mxu0 %v129
  %v241 = vpop.f32.mrf.mxu0
  %v242 = vadd.f32 %v62, %v241
  %243 = vmatmul.f32.gmra.mxu0 %v132
  %v244 = vpop.f32.mrf.mxu0
  %v245 = vadd.f32 %v62, %v244
  %246 = vmatmul.f32.gmra.mxu0 %v135
  %v247 = vpop.f32.mrf.mxu0
  %v248 = vadd.f32 %v62, %v247
  %249 = vmatmul.f32.gmra.mxu0 %v138
  %v250 = vpop.f32.mrf.mxu0
  %v251 = vadd.f32 %v62, %v250
  %252 = vmatmul.f32.gmra.mxu0 %v141
  %v253 = vpop.f32.mrf.mxu0
  %v254 = vadd.f32 %v62, %v253
  %255 = vmatmul.f32.gmra.mxu0 %v144
  %v256 = vpop.f32.mrf.mxu0
  %v257 = vadd.f32 %v62, %v256
  %258 = vmatmul.f32.gmra.mxu0 %v147
  %v259 = vpop.f32.mrf.mxu0
  %v260 = vadd.f32 %v62, %v259
  %261 = vmatmul.f32.gmra.mxu0 %v150
  %v262 = vpop.f32.mrf.mxu0
  %v263 = vadd.f32 %v62, %v262
  %264 = vmatmul.f32.gmra.mxu0 %v153
  %v265 = vpop.f32.mrf.mxu0
  %v266 = vadd.f32 %v62, %v265
  %267 = vmatmul.f32.gmra.mxu0 %v156
  %v268 = vpop.f32.mrf.mxu0
  %v269 = vadd.f32 %v62, %v268
  %270 = vmatmul.f32.gmra.mxu0 %v159
  %v271 = vpop.f32.mrf.mxu0
  %v272 = vadd.f32 %v62, %v271
  %273 = vdwg.mxu0
  %v274 = vmax.f32 %v179, 0.0
  %v275 = vmax.f32 %v182, 0.0
  %v276 = vmax.f32 %v185, 0.0
  %v277 = vmax.f32 %v188, 0.0
  %v278 = vmax.f32 %v191, 0.0
  %v279 = vmax.f32 %v194, 0.0
  %v280 = vmax.f32 %v197, 0.0
  %v281 = vmax.f32 %v200, 0.0
  %v282 = vmax.f32 %v203, 0.0
  %v283 = vmax.f32 %v206, 0.0
  %v284 = vmax.f32 %v209, 0.0
  %v285 = vmax.f32 %v212, 0.0
  %v286 = vmax.f32 %v215, 0.0
  %v287 = vmax.f32 %v218, 0.0
  %v288 = vmax.f32 %v221, 0.0
  %v289 = vmax.f32 %v224, 0.0
  %v290 = vmax.f32 %v227, 0.0
  %v291 = vmax.f32 %v230, 0.0
  %v292 = vmax.f32 %v233, 0.0
  %v293 = vmax.f32 %v236, 0.0
  %v294 = vmax.f32 %v239, 0.0
  %v295 = vmax.f32 %v242, 0.0
  %v296 = vmax.f32 %v245, 0.0
  %v297 = vmax.f32 %v248, 0.0
  %v298 = vmax.f32 %v251, 0.0
  %v299 = vmax.f32 %v254, 0.0
  %v300 = vmax.f32 %v257, 0.0
  %v301 = vmax.f32 %v260, 0.0
  %v302 = vmax.f32 %v263, 0.0
  %v303 = vmax.f32 %v266, 0.0
  %v304 = vmax.f32 %v269, 0.0
  %v305 = vmax.f32 %v272, 0.0
  %v306 = vld [vmem:[%s3] sm:$0xff]
  %v307 = vld [vmem:[%s3 + $0x8] sm:$0xff]
  %v308 = vld [vmem:[%s3 + $0x10] sm:$0xff]
  %v309 = vld [vmem:[%s3 + $0x18] sm:$0xff]
  %v310 = vld [vmem:[%s3 + $0x20] sm:$0xff]
  %v311 = vld [vmem:[%s3 + $0x28] sm:$0xff]
  %v312 = vld [vmem:[%s3 + $0x30] sm:$0xff]
  %v313 = vld [vmem:[%s3 + $0x38] sm:$0xff]
  %v314 = vld [vmem:[%s3 + $0x40] sm:$0xff]
  %v315 = vld [vmem:[%s3 + $0x48] sm:$0xff]
  %v316 = vld [vmem:[%s3 + $0x50] sm:$0xff]
  %v317 = vld [vmem:[%s3 + $0x58] sm:$0xff]
  %v318 = vld [vmem:[%s3 + $0x60] sm:$0xff]
  %v319 = vld [vmem:[%s3 + $0x68] sm:$0xff]
  %v320 = vld [vmem:[%s3 + $0x70] sm:$0xff]
  %v321 = vld [vmem:[%s3 + $0x78] sm:$0xff]
  %v322 = vld [vmem:[%s4] sm:$0x1]
  %v324 = vperm.slane %v322, 0
  %326 = vmatpush.msra.mxu0 %v321
  %327 = vmatpush.msra.mxu0 %v320
  %328 = vmatpush.msra.mxu0 %v319
  %329 = vmatpush.msra.mxu0 %v318
  %330 = vmatpush.msra.mxu0 %v317
  %331 = vmatpush.msra.mxu0 %v316
  %332 = vmatpush.msra.mxu0 %v315
  %333 = vmatpush.msra.mxu0 %v314
  %334 = vmatpush.msra.mxu0 %v313
  %335 = vmatpush.msra.mxu0 %v312
  %336 = vmatpush.msra.mxu0 %v311
  %337 = vmatpush.msra.mxu0 %v310
  %338 = vmatpush.msra.mxu0 %v309
  %339 = vmatpush.msra.mxu0 %v308
  %340 = vmatpush.msra.mxu0 %v307
  %341 = vmatpush.msra.mxu0 %v306
  %342 = vmatmul.f32.gmra.mxu0 %v274
  %v343 = vpop.f32.mrf.mxu0
  %v344 = vadd.f32 %v324, %v343
  %345 = vmatmul.f32.gmra.mxu0 %v275
  %v346 = vpop.f32.mrf.mxu0
  %v347 = vadd.f32 %v324, %v346
  %348 = vmatmul.f32.gmra.mxu0 %v276
  %v349 = vpop.f32.mrf.mxu0
  %v350 = vadd.f32 %v324, %v349
  %351 = vmatmul.f32.gmra.mxu0 %v277
  %v352 = vpop.f32.mrf.mxu0
  %v353 = vadd.f32 %v324, %v352
  %354 = vmatmul.f32.gmra.mxu0 %v278
  %v355 = vpop.f32.mrf.mxu0
  %v356 = vadd.f32 %v324, %v355
  %357 = vmatmul.f32.gmra.mxu0 %v279
  %v358 = vpop.f32.mrf.mxu0
  %v359 = vadd.f32 %v324, %v358
  %360 = vmatmul.f32.gmra.mxu0 %v280
  %v361 = vpop.f32.mrf.mxu0
  %v362 = vadd.f32 %v324, %v361
  %363 = vmatmul.f32.gmra.mxu0 %v281
  %v364 = vpop.f32.mrf.mxu0
  %v365 = vadd.f32 %v324, %v364
  %366 = vmatmul.f32.gmra.mxu0 %v282
  %v367 = vpop.f32.mrf.mxu0
  %v368 = vadd.f32 %v324, %v367
  %369 = vmatmul.f32.gmra.mxu0 %v283
  %v370 = vpop.f32.mrf.mxu0
  %v371 = vadd.f32 %v324, %v370
  %372 = vmatmul.f32.gmra.mxu0 %v284
  %v373 = vpop.f32.mrf.mxu0
  %v374 = vadd.f32 %v324, %v373
  %375 = vmatmul.f32.gmra.mxu0 %v285
  %v376 = vpop.f32.mrf.mxu0
  %v377 = vadd.f32 %v324, %v376
  %378 = vmatmul.f32.gmra.mxu0 %v286
  %v379 = vpop.f32.mrf.mxu0
  %v380 = vadd.f32 %v324, %v379
  %381 = vmatmul.f32.gmra.mxu0 %v287
  %v382 = vpop.f32.mrf.mxu0
  %v383 = vadd.f32 %v324, %v382
  %384 = vmatmul.f32.gmra.mxu0 %v288
  %v385 = vpop.f32.mrf.mxu0
  %v386 = vadd.f32 %v324, %v385
  %387 = vmatmul.f32.gmra.mxu0 %v289
  %v388 = vpop.f32.mrf.mxu0
  %v389 = vadd.f32 %v324, %v388
  %390 = vmatmul.f32.gmra.mxu0 %v290
  %v391 = vpop.f32.mrf.mxu0
  %v392 = vadd.f32 %v324, %v391
  %393 = vmatmul.f32.gmra.mxu0 %v291
  %v394 = vpop.f32.mrf.mxu0
  %v395 = vadd.f32 %v324, %v394
  %396 = vmatmul.f32.gmra.mxu0 %v292
  %v397 = vpop.f32.mrf.mxu0
  %v398 = vadd.f32 %v324, %v397
  %399 = vmatmul.f32.gmra.mxu0 %v293
  %v400 = vpop.f32.mrf.mxu0
  %v401 = vadd.f32 %v324, %v400
  %402 = vmatmul.f32.gmra.mxu0 %v294
  %v403 = vpop.f32.mrf.mxu0
  %v404 = vadd.f32 %v324, %v403
  %405 = vmatmul.f32.gmra.mxu0 %v295
  %v406 = vpop.f32.mrf.mxu0
  %v407 = vadd.f32 %v324, %v406
  %408 = vmatmul.f32.gmra.mxu0 %v296
  %v409 = vpop.f32.mrf.mxu0
  %v410 = vadd.f32 %v324, %v409
  %411 = vmatmul.f32.gmra.mxu0 %v297
  %v412 = vpop.f32.mrf.mxu0
  %v413 = vadd.f32 %v324, %v412
  %414 = vmatmul.f32.gmra.mxu0 %v298
  %v415 = vpop.f32.mrf.mxu0
  %v416 = vadd.f32 %v324, %v415
  %417 = vmatmul.f32.gmra.mxu0 %v299
  %v418 = vpop.f32.mrf.mxu0
  %v419 = vadd.f32 %v324, %v418
  %420 = vmatmul.f32.gmra.mxu0 %v300
  %v421 = vpop.f32.mrf.mxu0
  %v422 = vadd.f32 %v324, %v421
  %423 = vmatmul.f32.gmra.mxu0 %v301
  %v424 = vpop.f32.mrf.mxu0
  %v425 = vadd.f32 %v324, %v424
  %426 = vmatmul.f32.gmra.mxu0 %v302
  %v427 = vpop.f32.mrf.mxu0
  %v428 = vadd.f32 %v324, %v427
  %429 = vmatmul.f32.gmra.mxu0 %v303
  %v430 = vpop.f32.mrf.mxu0
  %v431 = vadd.f32 %v324, %v430
  %432 = vmatmul.f32.gmra.mxu0 %v304
  %v433 = vpop.f32.mrf.mxu0
  %v434 = vadd.f32 %v324, %v433
  %435 = vmatmul.f32.gmra.mxu0 %v305
  %v436 = vpop.f32.mrf.mxu0
  %v437 = vadd.f32 %v324, %v436
  %438 = vdwg.mxu0
  %vm439 = vcmask 261120
  %440 = vst.msk [vmem:[%s5] sm:$0xff] %vm439, %v344
  %441 = vst.msk [vmem:[%s5 + $0x8] sm:$0xff] %vm439, %v347
  %442 = vst.msk [vmem:[%s5 + $0x10] sm:$0xff] %vm439, %v350
  %443 = vst.msk [vmem:[%s5 + $0x18] sm:$0xff] %vm439, %v353
  %444 = vst.msk [vmem:[%s5 + $0x20] sm:$0xff] %vm439, %v356
  %445 = vst.msk [vmem:[%s5 + $0x28] sm:$0xff] %vm439, %v359
  %446 = vst.msk [vmem:[%s5 + $0x30] sm:$0xff] %vm439, %v362
  %447 = vst.msk [vmem:[%s5 + $0x38] sm:$0xff] %vm439, %v365
  %448 = vst.msk [vmem:[%s5 + $0x40] sm:$0xff] %vm439, %v368
  %449 = vst.msk [vmem:[%s5 + $0x48] sm:$0xff] %vm439, %v371
  %450 = vst.msk [vmem:[%s5 + $0x50] sm:$0xff] %vm439, %v374
  %451 = vst.msk [vmem:[%s5 + $0x58] sm:$0xff] %vm439, %v377
  %452 = vst.msk [vmem:[%s5 + $0x60] sm:$0xff] %vm439, %v380
  %453 = vst.msk [vmem:[%s5 + $0x68] sm:$0xff] %vm439, %v383
  %454 = vst.msk [vmem:[%s5 + $0x70] sm:$0xff] %vm439, %v386
  %455 = vst.msk [vmem:[%s5 + $0x78] sm:$0xff] %vm439, %v389
  %456 = vst.msk [vmem:[%s5 + $0x80] sm:$0xff] %vm439, %v392
  %457 = vst.msk [vmem:[%s5 + $0x88] sm:$0xff] %vm439, %v395
  %458 = vst.msk [vmem:[%s5 + $0x90] sm:$0xff] %vm439, %v398
  %459 = vst.msk [vmem:[%s5 + $0x98] sm:$0xff] %vm439, %v401
  %460 = vst.msk [vmem:[%s5 + $0xa0] sm:$0xff] %vm439, %v404
  %461 = vst.msk [vmem:[%s5 + $0xa8] sm:$0xff] %vm439, %v407
  %462 = vst.msk [vmem:[%s5 + $0xb0] sm:$0xff] %vm439, %v410
  %463 = vst.msk [vmem:[%s5 + $0xb8] sm:$0xff] %vm439, %v413
  %464 = vst.msk [vmem:[%s5 + $0xc0] sm:$0xff] %vm439, %v416
  %465 = vst.msk [vmem:[%s5 + $0xc8] sm:$0xff] %vm439, %v419
  %466 = vst.msk [vmem:[%s5 + $0xd0] sm:$0xff] %vm439, %v422
  %467 = vst.msk [vmem:[%s5 + $0xd8] sm:$0xff] %vm439, %v425
  %468 = vst.msk [vmem:[%s5 + $0xe0] sm:$0xff] %vm439, %v428
  %469 = vst.msk [vmem:[%s5 + $0xe8] sm:$0xff] %vm439, %v431
  %470 = vst.msk [vmem:[%s5 + $0xf0] sm:$0xff] %vm439, %v434
  %471 = vst.msk [vmem:[%s5 + $0xf8] sm:$0xff] %vm439, %v437
  // Predicated region
  $region22: #{node_readout.1} parent=0 // pred_check
    _
  $region23: #{node_readout.1} parent=0 // pred_check_branch
    %473 = sbr.rel (0) target = $region25
  $region24: #{node_readout.1} parent=0 // pred_region
    _
  $region25: #{node_readout.1} parent=0 // pred_fallthru
    _
  // Predicated region
  $region26: #{node_readout.1} parent=0 // pred_check
    _
  $region27: #{node_readout.1} parent=0 // pred_check_branch
    %475 = sbr.rel (0) target = $region29
  $region28: #{node_readout.1} parent=0 // pred_region
    _
  $region29: #{node_readout.1} parent=0 // pred_fallthru
    _

</llo_original>
